<compile_context>
chip_gen: v6e
topology: v6e:2x2x1
jax: 0.10.0
libtpu: 0.0.40
codegen_flags: <defaults>
</compile_context>

<pallas_src>
import functools

import jax
import jax.numpy as jnp
import numpy as np
from jax.experimental import pallas as pl
from jax.experimental.pallas import tpu as pltpu


# ----------------------------------------------------------------------------
# Module configuration (mirrors MLPEmbedding.__init__)
# ----------------------------------------------------------------------------
TIME_KEYS = {
    "month": 12, "day": 31, "hour": 24, "minute": 60,
    "second": 60, "day_of_week": 7, "day_of_year": 366,
}

HIDDEN = 32
ENCODER_CAT = ["month", "day_of_week", "store_id"]
DECODER_CAT = ["month", "item_id"]
EMBEDDING_SIZES = {"store_id": (5, 3), "item_id": (7, 4), "month": (12, 6)}
N_ENC_CONT = 4
N_DEC_CONT = 3
B, S = 2, 8


def _round_up(x, m):
    return (x + m - 1) // m * m


# ----------------------------------------------------------------------------
# Pallas kernel: per (branch, row-tile) grid point
#   x   = [cont | one_hot(cat_0) | one_hot(cat_1) | ...]   (built in-kernel, VPU)
#   out = x @ W_fused + b                                   (MXU, f32 accumulation)
# ----------------------------------------------------------------------------
def fused_mlp_embed_kernel(cont_ref, cat_ref, w_ref, b_ref, o_ref, *, col_offsets):
    tm, FP = cont_ref.shape
    # cont_ref already holds the continuous features in lanes [0, n_cont) and zeros
    # elsewhere, so the one-hot lanes are simply added on top (disjoint lane ranges).
    x = cont_ref[...]                                            # [tm, FP] f32
    lane = jax.lax.broadcasted_iota(jnp.int32, (tm, FP), 1)      # [tm, FP] i32
    cat = cat_ref[...]                                           # [tm, Kc] i32
    for j, off in enumerate(col_offsets):                        # static unroll (Kc small)
        x = x + (lane == (cat[:, j:j + 1] + off)).astype(jnp.float32)
    y = jnp.dot(x.astype(jnp.bfloat16), w_ref[...],
                preferred_element_type=jnp.float32)              # [tm, HP] f32
    o_ref[...] = (y + b_ref[...]).astype(o_ref.dtype)


def fused_mlp_embed(cont_stack, cat_stack, w_stack, b_stack, col_offsets, tm):
    """cont_stack: [G,NP,FP] f32, cat_stack: [G,NP,Kc] i32,
    w_stack: [G,FP,HP] bf16, b_stack: [G,1,HP] f32 -> [G,NP,HP] f32."""
    G, NP, FP = cont_stack.shape
    Kc = cat_stack.shape[2]
    HP = w_stack.shape[2]
    assert NP % tm == 0
    kernel = functools.partial(fused_mlp_embed_kernel, col_offsets=col_offsets)
    return pl.pallas_call(
        kernel,
        out_shape=jax.ShapeDtypeStruct((G, NP, HP), jnp.float32),
        grid=(G, NP // tm),
        in_specs=[
            pl.BlockSpec((None, tm, FP), lambda g, r: (g, r, 0)),
            pl.BlockSpec((None, tm, Kc), lambda g, r: (g, r, 0)),
            pl.BlockSpec((None, FP, HP), lambda g, r: (g, 0, 0)),
            pl.BlockSpec((None, 1, HP), lambda g, r: (g, 0, 0)),
        ],
        out_specs=pl.BlockSpec((None, tm, HP), lambda g, r: (g, r, 0)),
        compiler_params=pltpu.CompilerParams(
            dimension_semantics=("parallel", "parallel")),
    )(cont_stack, cat_stack, w_stack, b_stack)


# ----------------------------------------------------------------------------
# Parameters (deterministic synthetic, matching the PyTorch module's shapes)
# ----------------------------------------------------------------------------
def build_params(key):
    params = {}
    ks = iter(jax.random.split(key, 16))

    time_emb_keys = []
    for k in ENCODER_CAT + DECODER_CAT:
        if k in TIME_KEYS and k not in time_emb_keys:
            time_emb_keys.append(k)
    params["time_tables"] = {
        k: 0.1 * jax.random.normal(next(ks), (TIME_KEYS[k], HIDDEN), jnp.float32)
        for k in time_emb_keys
    }

    cat_emb_keys = []
    for k in ENCODER_CAT + DECODER_CAT:
        if k in EMBEDDING_SIZES and k not in time_emb_keys and k not in cat_emb_keys:
            cat_emb_keys.append(k)
    params["cat_tables"] = {
        k: 0.1 * jax.random.normal(next(ks), EMBEDDING_SIZES[k], jnp.float32)
        for k in cat_emb_keys
    }

    enc_emb_size = sum(EMBEDDING_SIZES[k][1] for k in ENCODER_CAT if k in cat_emb_keys)
    dec_emb_size = sum(EMBEDDING_SIZES[k][1] for k in DECODER_CAT if k in cat_emb_keys)

    # Linear layers, stored as [in, out] for x @ w.
    params["enc_w"] = 0.1 * jax.random.normal(next(ks), (N_ENC_CONT + enc_emb_size, HIDDEN), jnp.float32)
    params["enc_b"] = 0.1 * jax.random.normal(next(ks), (1, HIDDEN), jnp.float32)
    params["dec_w"] = 0.1 * jax.random.normal(next(ks), (N_DEC_CONT + dec_emb_size, HIDDEN), jnp.float32)
    params["dec_b"] = 0.1 * jax.random.normal(next(ks), (1, HIDDEN), jnp.float32)
    return params


# ----------------------------------------------------------------------------
# Glue: fused-weight construction + operand packing
# ----------------------------------------------------------------------------
def _key_card(params, key):
    if key in params["time_tables"]:
        return params["time_tables"][key].shape[0]
    if key in params["cat_tables"]:
        return params["cat_tables"][key].shape[0]
    return 1  # key embeds to nothing -> one inert (zero) row


def _fused_weight(params, cat_names, n_cont, w, col_cards, c_max, FP, HP):
    """Fold linear weight + categorical tables + time tables into one [FP, HP] matrix."""
    blocks = [jnp.pad(w[:n_cont], ((0, c_max - n_cont), (0, 0)))]   # cont rows
    row = n_cont  # next unused row of the branch's linear weight
    for j, card in enumerate(col_cards):
        if j < len(cat_names) and cat_names[j] in params["time_tables"]:
            blk = params["time_tables"][cat_names[j]]                # [card_key, H]
        elif j < len(cat_names) and cat_names[j] in params["cat_tables"]:
            tbl = params["cat_tables"][cat_names[j]]                 # [card_key, dim]
            dim = tbl.shape[1]
            blk = tbl @ w[row:row + dim]                             # [card_key, H]
            row += dim
        else:
            blk = jnp.zeros((card, HIDDEN), w.dtype)
        blocks.append(jnp.pad(blk, ((0, card - blk.shape[0]), (0, 0))))
    fused = jnp.concatenate(blocks, axis=0)
    return jnp.pad(fused, ((0, FP - fused.shape[0]), (0, HP - HIDDEN)))


def _branch_inputs(params, cont, cat, cat_names, NP, FP, k_max):
    bsz, seq, ncont = cont.shape
    N = bsz * seq
    cont_p = jnp.pad(cont.reshape(N, ncont), ((0, NP - N), (0, FP - ncont)))  # [NP,FP] f32
    cat2d = cat.reshape(N, -1).astype(jnp.int32)
    # Zero indices for keys that embed to nothing (keeps their one-hot inside inert lanes).
    keep = jnp.array([name in params["time_tables"] or name in params["cat_tables"]
                      for name in cat_names], dtype=jnp.int32)
    cat2d = cat2d * keep[None, :]
    cat_p = jnp.pad(cat2d, ((0, NP - N), (0, k_max - cat2d.shape[1])))        # [NP,Kc] i32
    return cont_p, cat_p


def mlp_embedding_forward(params, encoder_cont, decoder_cont, encoder_cat, decoder_cat):
    bsz, seq = encoder_cont.shape[:2]
    N = bsz * seq

    branches = [
        (ENCODER_CAT, N_ENC_CONT, params["enc_w"], params["enc_b"], encoder_cont, encoder_cat),
        (DECODER_CAT, N_DEC_CONT, params["dec_w"], params["dec_b"], decoder_cont, decoder_cat),
    ]

    c_max = max(N_ENC_CONT, N_DEC_CONT)
    k_max = max(len(ENCODER_CAT), len(DECODER_CAT))
    col_cards = [
        max(_key_card(params, names[j]) for names, *_ in branches if j < len(names))
        for j in range(k_max)
    ]
    col_offsets = tuple(c_max + sum(col_cards[:j]) for j in range(k_max))
    FP = _round_up(c_max + sum(col_cards), 8)     # MXU contraction dim: sublane-align only
    HP = _round_up(HIDDEN, 128)                   # store dim: lane-dense
    NP = _round_up(N, 8)
    tm = min(512, NP)
    NP = _round_up(NP, tm)

    cont_list, cat_list, w_list, b_list = [], [], [], []
    for names, ncont, w, b, cont, cat in branches:
        cp, ip = _branch_inputs(params, cont, cat, names, NP, FP, k_max)
        cont_list.append(cp)
        cat_list.append(ip)
        w_list.append(_fused_weight(params, names, ncont, w, col_cards, c_max, FP, HP))
        b_list.append(jnp.pad(b, ((0, 0), (0, HP - HIDDEN))))

    cont_stack = jnp.stack(cont_list)                          # [2, NP, FP] f32
    cat_stack = jnp.stack(cat_list)                            # [2, NP, Kc] i32
    w_stack = jnp.stack(w_list).astype(jnp.bfloat16)           # [2, FP, HP] bf16
    b_stack = jnp.stack(b_list)                                # [2, 1,  HP] f32

    out = fused_mlp_embed(cont_stack, cat_stack, w_stack, b_stack, col_offsets, tm)

    enc_out = out[0, :N, :HIDDEN].reshape(bsz, seq, HIDDEN)
    dec_out = out[1, :N, :HIDDEN].reshape(bsz, seq, HIDDEN)
    return enc_out, dec_out


# ----------------------------------------------------------------------------
# Pure-JAX reference (mirrors the PyTorch math exactly, in f32)
# ----------------------------------------------------------------------------
def _branch_ref(params, cont, cat, cat_names, w, b):
    bsz, seq, ncont = cont.shape
    N = bsz * seq
    tsum = jnp.zeros((N, HIDDEN), jnp.float32)
    slabs = [cont.reshape(N, ncont)]
    for i, name in enumerate(cat_names):
        idx = cat[..., i].reshape(N)
        if name in params["time_tables"]:
            tsum = tsum + jnp.take(params["time_tables"][name], idx, axis=0)
        elif name in params["cat_tables"]:
            slabs.append(jnp.take(params["cat_tables"][name], idx, axis=0))
    x2d = jnp.concatenate(slabs, axis=-1)
    y = jnp.dot(x2d, w, preferred_element_type=jnp.float32)
    return (y + b + tsum).reshape(bsz, seq, HIDDEN)


def mlp_embedding_ref(params, encoder_cont, decoder_cont, encoder_cat, decoder_cat):
    return (_branch_ref(params, encoder_cont, encoder_cat, ENCODER_CAT,
                        params["enc_w"], params["enc_b"]),
            _branch_ref(params, decoder_cont, decoder_cat, DECODER_CAT,
                        params["dec_w"], params["dec_b"]))


# ----------------------------------------------------------------------------
if __name__ == "__main__":
    key = jax.random.PRNGKey(0)
    kp, k1, k2, k3, k4 = jax.random.split(key, 5)

    params = build_params(kp)

    encoder_cont = jax.random.normal(k1, (B, S, N_ENC_CONT), jnp.float32)
    decoder_cont = jax.random.normal(k2, (B, S, N_DEC_CONT), jnp.float32)
    # encoder_cat columns: [month, day_of_week, store_id]
    e3 = jax.random.split(k3, 3)
    encoder_cat = jnp.concatenate([
        jax.random.randint(e3[0], (B, S, 1), 0, 12),
        jax.random.randint(e3[1], (B, S, 1), 0, 7),
        jax.random.randint(e3[2], (B, S, 1), 0, 5),
    ], axis=-1).astype(jnp.int32)
    # decoder_cat columns: [month, item_id]
    d2 = jax.random.split(k4, 2)
    decoder_cat = jnp.concatenate([
        jax.random.randint(d2[0], (B, S, 1), 0, 12),
        jax.random.randint(d2[1], (B, S, 1), 0, 7),
    ], axis=-1).astype(jnp.int32)

    enc_out, dec_out = mlp_embedding_forward(
        params, encoder_cont, decoder_cont, encoder_cat, decoder_cat)
    jax.block_until_ready((enc_out, dec_out))

    # Check vs. the f32 (PyTorch-equivalent) math; tolerance covers the bf16 MXU operands.
    enc_ref, dec_ref = mlp_embedding_ref(
        params, encoder_cont, decoder_cont, encoder_cat, decoder_cat)
    np.testing.assert_allclose(np.asarray(enc_out), np.asarray(enc_ref), rtol=2e-2, atol=2e-2)
    np.testing.assert_allclose(np.asarray(dec_out), np.asarray(dec_ref), rtol=2e-2, atol=2e-2)

    assert enc_out.shape == (B, S, HIDDEN) and dec_out.shape == (B, S, HIDDEN)
    print("KERNEL_OK")
</pallas_src>

<mosaic_0001>
module attributes {stable_mosaic.version = 11 : i64} {
  func.func @fused_mlp_embed_kernel(%arg0: i32, %arg1: i32, %arg2: memref<1x16x32xf32, #tpu.memory_space<vmem>>, %arg3: memref<1x16x3xi32, #tpu.memory_space<vmem>>, %arg4: memref<1x32x128xbf16, #tpu.memory_space<vmem>>, %arg5: memref<1x1x128xf32, #tpu.memory_space<vmem>>, %arg6: memref<1x16x128xf32, #tpu.memory_space<vmem>>) attributes {dimension_semantics = [#tpu.dimension_semantics<parallel>, #tpu.dimension_semantics<parallel>], iteration_bounds = array<i64: 2, 1>, scalar_prefetch = 0 : i64, scratch_operands = 0 : i64, tpu.core_type = #tpu.core_type<tc>, window_params = [{transform_indices = @transform_0, window_bounds = array<i64: 1, 16, 32>}, {transform_indices = @transform_1, window_bounds = array<i64: 1, 16, 3>}, {transform_indices = @transform_2, window_bounds = array<i64: 1, 32, 128>}, {transform_indices = @transform_3, window_bounds = array<i64: 1, 1, 128>}, {transform_indices = @transform_4, window_bounds = array<i64: 1, 16, 128>}]} {
    %c0 = arith.constant 0 : index
    %c0_0 = arith.constant 0 : index
    %c0_1 = arith.constant 0 : index
    %0 = vector.load %arg2[%c0, %c0_0, %c0_1] : memref<1x16x32xf32, #tpu.memory_space<vmem>>, vector<1x16x32xf32>
    %1 = vector.shape_cast %0 : vector<1x16x32xf32> to vector<16x32xf32>
    %2 = tpu.iota {dimensions = array<i32: 1>} : vector<16x32xi32>
    %c0_2 = arith.constant 0 : index
    %c0_3 = arith.constant 0 : index
    %c0_4 = arith.constant 0 : index
    %3 = vector.load %arg3[%c0_2, %c0_3, %c0_4] : memref<1x16x3xi32, #tpu.memory_space<vmem>>, vector<1x16x3xi32>
    %4 = vector.shape_cast %3 : vector<1x16x3xi32> to vector<16x3xi32>
    %5 = vector.extract_strided_slice %4 {offsets = [0, 0], sizes = [16, 1], strides = [1, 1]} : vector<16x3xi32> to vector<16x1xi32>
    %c4_i32 = arith.constant 4 : i32
    %6 = vector.broadcast %c4_i32 : i32 to vector<16x1xi32>
    %7 = arith.addi %5, %6 : vector<16x1xi32>
    %8 = vector.broadcast %7 : vector<16x1xi32> to vector<16x32xi32>
    %9 = arith.cmpi eq, %2, %8 : vector<16x32xi32>
    %10 = arith.extui %9 : vector<16x32xi1> to vector<16x32xi32>
    %11 = arith.sitofp %10 : vector<16x32xi32> to vector<16x32xf32>
    %12 = arith.addf %1, %11 : vector<16x32xf32>
    %13 = vector.extract_strided_slice %4 {offsets = [0, 1], sizes = [16, 1], strides = [1, 1]} : vector<16x3xi32> to vector<16x1xi32>
    %c16_i32 = arith.constant 16 : i32
    %14 = vector.broadcast %c16_i32 : i32 to vector<16x1xi32>
    %15 = arith.addi %13, %14 : vector<16x1xi32>
    %16 = vector.broadcast %15 : vector<16x1xi32> to vector<16x32xi32>
    %17 = arith.cmpi eq, %2, %16 : vector<16x32xi32>
    %18 = arith.extui %17 : vector<16x32xi1> to vector<16x32xi32>
    %19 = arith.sitofp %18 : vector<16x32xi32> to vector<16x32xf32>
    %20 = arith.addf %12, %19 : vector<16x32xf32>
    %21 = vector.extract_strided_slice %4 {offsets = [0, 2], sizes = [16, 1], strides = [1, 1]} : vector<16x3xi32> to vector<16x1xi32>
    %c23_i32 = arith.constant 23 : i32
    %22 = vector.broadcast %c23_i32 : i32 to vector<16x1xi32>
    %23 = arith.addi %21, %22 : vector<16x1xi32>
    %24 = vector.broadcast %23 : vector<16x1xi32> to vector<16x32xi32>
    %25 = arith.cmpi eq, %2, %24 : vector<16x32xi32>
    %26 = arith.extui %25 : vector<16x32xi1> to vector<16x32xi32>
    %27 = arith.sitofp %26 : vector<16x32xi32> to vector<16x32xf32>
    %28 = arith.addf %20, %27 : vector<16x32xf32>
    %29 = arith.truncf %28 : vector<16x32xf32> to vector<16x32xbf16>
    %c0_5 = arith.constant 0 : index
    %c0_6 = arith.constant 0 : index
    %c0_7 = arith.constant 0 : index
    %30 = vector.load %arg4[%c0_5, %c0_6, %c0_7] : memref<1x32x128xbf16, #tpu.memory_space<vmem>>, vector<1x32x128xbf16>
    %31 = vector.shape_cast %30 : vector<1x32x128xbf16> to vector<32x128xbf16>
    %cst = arith.constant dense<0.000000e+00> : vector<16x128xf32>
    %32 = tpu.matmul %29, %31, %cst {dimension_numbers = #tpu.dot_dimension_numbers<[1], [0], [0], [1], [0, 0, 1, 1], [], []>} : vector<16x32xbf16>, vector<32x128xbf16>, vector<16x128xf32> -> vector<16x128xf32>
    %c0_8 = arith.constant 0 : index
    %c0_9 = arith.constant 0 : index
    %c0_10 = arith.constant 0 : index
    %33 = vector.load %arg5[%c0_8, %c0_9, %c0_10] : memref<1x1x128xf32, #tpu.memory_space<vmem>>, vector<1x1x128xf32>
    %34 = vector.shape_cast %33 : vector<1x1x128xf32> to vector<1x128xf32>
    %35 = vector.broadcast %34 : vector<1x128xf32> to vector<16x128xf32>
    %36 = arith.addf %32, %35 : vector<16x128xf32>
    %c0_11 = arith.constant 0 : index
    %c0_12 = arith.constant 0 : index
    %c0_13 = arith.constant 0 : index
    %37 = vector.load %arg6[%c0_11, %c0_12, %c0_13] : memref<1x16x128xf32, #tpu.memory_space<vmem>>, vector<1x16x128xf32>
    %38 = vector.shape_cast %37 : vector<1x16x128xf32> to vector<16x128xf32>
    %39 = vector.shape_cast %36 : vector<16x128xf32> to vector<1x16x128xf32>
    tpu.vector_store %arg6[%c0_11, %c0_12, %c0_13], %39 {strides = array<i32>} : memref<1x16x128xf32, #tpu.memory_space<vmem>>, vector<1x16x128xf32>,
    return
  }
  func.func @transform_0(%arg0: i32, %arg1: i32) -> (i32, i32, i32) {
    %c0_i32 = arith.constant 0 : i32
    %c0_i32_0 = arith.constant 0 : i32
    return %arg0, %arg1, %c0_i32 : i32, i32, i32
  }
  func.func @transform_1(%arg0: i32, %arg1: i32) -> (i32, i32, i32) {
    %c0_i32 = arith.constant 0 : i32
    %c0_i32_0 = arith.constant 0 : i32
    return %arg0, %arg1, %c0_i32 : i32, i32, i32
  }
  func.func @transform_2(%arg0: i32, %arg1: i32) -> (i32, i32, i32) {
    %c0_i32 = arith.constant 0 : i32
    %c0_i32_0 = arith.constant 0 : i32
    %c0_i32_1 = arith.constant 0 : i32
    return %arg0, %c0_i32, %c0_i32_0 : i32, i32, i32
  }
  func.func @transform_3(%arg0: i32, %arg1: i32) -> (i32, i32, i32) {
    %c0_i32 = arith.constant 0 : i32
    %c0_i32_0 = arith.constant 0 : i32
    %c0_i32_1 = arith.constant 0 : i32
    return %arg0, %c0_i32, %c0_i32_0 : i32, i32, i32
  }
  func.func @transform_4(%arg0: i32, %arg1: i32) -> (i32, i32, i32) {
    %c0_i32 = arith.constant 0 : i32
    %c0_i32_0 = arith.constant 0 : i32
    return %arg0, %arg1, %c0_i32 : i32, i32, i32
  }
}

</mosaic_0001>

<llo_original>
// kernel: tpu_custom_call.1
$region0: #{tpu_custom_call.1}
  #allocation0 [shape = 'u32[]', space=smem, size = 0x4, offset = 0x4, fixed_abs, tag = 'smem constant byte address 0x4 - core index']
  #allocation1 [shape = 'u32[144,128]{1,0:T(1,128)}', space=vmem, size = 0x12000, scoped, tag = 'internal scratch']
  %s0 = inlined_call_operand.vmem [shape: f32[2,16,32], index: 0, kind: input, shape index: {}]
  %s1 = inlined_call_operand.vmem [shape: s32[2,16,3], index: 1, kind: input, shape index: {}]
  %s2 = inlined_call_operand.hbm [shape: bf16[2,32,128], index: 2, kind: input, shape index: {}]
  %s3 = inlined_call_operand.vmem [shape: f32[2,1,128], index: 3, kind: input, shape index: {}]
  %s4 = inlined_call_operand.hbm [shape: f32[2,16,128], index: 4, kind: output, shape index: {}]
  %s5 = sld [smem:[#allocation0]]
  $region53: #{tpu_custom_call.1} parent=0
    _
  %s7 = ssub.s32 1, %s5
  %s8 = scalar_select 0, %s7, %s5
  $region1: #{tpu_custom_call.1} parent=0
    #allocation2 [shape = 'u8[16384]{0}', space=vmem, size = 0x4000, scoped, tag = 'input window, operand 2']
    #allocation3 [shape = 's32[2]{0}', space=sflag, size = 0x8, scoped, tag = 'scoped memory for tpu_custom_call.1']
    #allocation4 [shape = 's32[2]{0}', space=sflag, size = 0x8, scoped, tag = 'scoped memory for tpu_custom_call.1']
    #allocation5 [shape = 'u8[16384]{0}', space=vmem, size = 0x4000, scoped, tag = 'output window, operand 0']
    %9 = vsyncpa [#allocation3], 0
    %s10 = scalar_lea.sflag [#allocation3], 1
    %11 = vsyncpa %s10, 0
    %12 = vsyncpa [#allocation4], 0
    %s13 = scalar_lea.sflag [#allocation4], 1
    %14 = vsyncpa %s13, 0
    loop: start=0, step=1, limit=4
    $region2: #{tpu_custom_call.1} parent=1 // loop_pre_header
      _
    $region3: #{tpu_custom_call.1} parent=1 // loop_header
      %s16 = sphi 0, %s20
      %p17 = scmp.ge.s32.totalorder %s16, 4
      %s23 = sphi 0, %s35
      %s24 = sphi 0, %s31
      %s25 = sphi 0, %s23
      %s26 = sphi 0, %s24
      %s27 = sphi 0, %s25
      %s28 = sphi 0, %s26
      %s40 = sphi 0, %s42
      %s43 = sphi 0, %s40
      %s44 = sphi 0, %s43
      %s60 = sphi 0, %s44
      %s68 = sphi 0, %s70
      %s71 = sphi 0, %s68
      %s72 = sphi 0, %s71
      %s88 = sphi 0, %s72
      %s94 = sphi 0, %s96
      %s97 = sphi 0, %s94
      %s98 = sphi 0, %s97
      %s114 = sphi 0, %s98
      %s120 = sphi 0, %s122
      %s123 = sphi 0, %s120
      %s124 = sphi 0, %s123
      %s140 = sphi 0, %s124
      %s148 = sphi 0, %s150
      %s151 = sphi 0, %s148
      %s152 = sphi 0, %s151
      %s168 = sphi 0, %s152
    $region4: #{tpu_custom_call.1} parent=1 // loop_header_branch
      %19 = sbr.rel (%p17) target = $region8
    $region5: #{tpu_custom_call.1} parent=1 // loop_body
      %s21 = ssub.s32 %s16, 1
      %s22 = ssub.s32 %s16, 2
      %s29 = sadd.s32 1, %s24
      %p30 = scmp.ge.s32.totalorder %s29, 1
      %s31 = scalar_select %p30, 0, %s29
      %s32 = sadd.s32 1, %s23
      %s33 = scalar_select %p30, %s32, %s23
      %p34 = scmp.ge.s32.totalorder %s33, 2
      %s35 = scalar_select %p34, 0, %s33
      %s36 = ssub.s32 %s23, %s35
      %s37 = ssub.s32 %s24, %s31
      %s38 = sor.u32 %s36, %s37
      %p39 = scmp.eq.s32.totalorder %s38, 0
      %s41 = sadd.s32 %s40, 1
      %s42 = scalar_select %p39, %s40, %s41
      %p45 = pneg %p39
      %p46 = scmp.eq.s32.totalorder %s16, 1
      %p47 = por %p45, %p46
      %p48 = scmp.ne.s32.totalorder %s40, %s43
      %p49 = scmp.eq.s32.totalorder %s16, 0
      %p50 = por %p48, %p49
      %p51 = scmp.ne.s32.totalorder %s40, %s43
      %p52 = scmp.eq.s32.totalorder %s21, 1
      %p53 = por %p51, %p52
      %p54 = scmp.ne.s32.totalorder %s43, %s44
      %p55 = scmp.eq.s32.totalorder %s21, 0
      %p56 = por %p54, %p55
      %p57 = scmp.ne.s32.totalorder %s43, %s44
      %p58 = scmp.eq.s32.totalorder %s22, 1
      %p59 = por %p57, %p58
      %p61 = scmp.ne.s32.totalorder %s44, %s60
      %p62 = scmp.eq.s32.totalorder %s22, 0
      %p63 = por %p61, %p62
      %s64 = ssub.s32 %s23, %s35
      %s65 = ssub.s32 %s24, %s31
      %s66 = sor.u32 %s64, %s65
      %p67 = scmp.eq.s32.totalorder %s66, 0
      %s69 = sadd.s32 %s68, 1
      %s70 = scalar_select %p67, %s68, %s69
      %p73 = pneg %p67
      %p74 = scmp.eq.s32.totalorder %s16, 1
      %p75 = por %p73, %p74
      %p76 = scmp.ne.s32.totalorder %s68, %s71
      %p77 = scmp.eq.s32.totalorder %s16, 0
      %p78 = por %p76, %p77
      %p79 = scmp.ne.s32.totalorder %s68, %s71
      %p80 = scmp.eq.s32.totalorder %s21, 1
      %p81 = por %p79, %p80
      %p82 = scmp.ne.s32.totalorder %s71, %s72
      %p83 = scmp.eq.s32.totalorder %s21, 0
      %p84 = por %p82, %p83
      %p85 = scmp.ne.s32.totalorder %s71, %s72
      %p86 = scmp.eq.s32.totalorder %s22, 1
      %p87 = por %p85, %p86
      %p89 = scmp.ne.s32.totalorder %s72, %s88
      %p90 = scmp.eq.s32.totalorder %s22, 0
      %p91 = por %p89, %p90
      %s92 = ssub.s32 %s23, %s35
      %p93 = scmp.eq.s32.totalorder %s92, 0
      %s95 = sadd.s32 %s94, 1
      %s96 = scalar_select %p93, %s94, %s95
      %p99 = pneg %p93
      %p100 = scmp.eq.s32.totalorder %s16, 1
      %p101 = por %p99, %p100
      %p102 = scmp.ne.s32.totalorder %s94, %s97
      %p103 = scmp.eq.s32.totalorder %s16, 0
      %p104 = por %p102, %p103
      %p105 = scmp.ne.s32.totalorder %s94, %s97
      %p106 = scmp.eq.s32.totalorder %s21, 1
      %p107 = por %p105, %p106
      %p108 = scmp.ne.s32.totalorder %s97, %s98
      %p109 = scmp.eq.s32.totalorder %s21, 0
      %p110 = por %p108, %p109
      %p111 = scmp.ne.s32.totalorder %s97, %s98
      %p112 = scmp.eq.s32.totalorder %s22, 1
      %p113 = por %p111, %p112
      %p115 = scmp.ne.s32.totalorder %s98, %s114
      %p116 = scmp.eq.s32.totalorder %s22, 0
      %p117 = por %p115, %p116
      %s118 = ssub.s32 %s23, %s35
      %p119 = scmp.eq.s32.totalorder %s118, 0
      %s121 = sadd.s32 %s120, 1
      %s122 = scalar_select %p119, %s120, %s121
      %p125 = pneg %p119
      %p126 = scmp.eq.s32.totalorder %s16, 1
      %p127 = por %p125, %p126
      %p128 = scmp.ne.s32.totalorder %s120, %s123
      %p129 = scmp.eq.s32.totalorder %s16, 0
      %p130 = por %p128, %p129
      %p131 = scmp.ne.s32.totalorder %s120, %s123
      %p132 = scmp.eq.s32.totalorder %s21, 1
      %p133 = por %p131, %p132
      %p134 = scmp.ne.s32.totalorder %s123, %s124
      %p135 = scmp.eq.s32.totalorder %s21, 0
      %p136 = por %p134, %p135
      %p137 = scmp.ne.s32.totalorder %s123, %s124
      %p138 = scmp.eq.s32.totalorder %s22, 1
      %p139 = por %p137, %p138
      %p141 = scmp.ne.s32.totalorder %s124, %s140
      %p142 = scmp.eq.s32.totalorder %s22, 0
      %p143 = por %p141, %p142
      %s144 = ssub.s32 %s23, %s35
      %s145 = ssub.s32 %s24, %s31
      %s146 = sor.u32 %s144, %s145
      %p147 = scmp.eq.s32.totalorder %s146, 0
      %s149 = sadd.s32 %s148, 1
      %s150 = scalar_select %p147, %s148, %s149
      %p153 = pneg %p147
      %p154 = scmp.eq.s32.totalorder %s16, 1
      %p155 = por %p153, %p154
      %p156 = scmp.ne.s32.totalorder %s148, %s151
      %p157 = scmp.eq.s32.totalorder %s16, 0
      %p158 = por %p156, %p157
      %p159 = scmp.ne.s32.totalorder %s148, %s151
      %p160 = scmp.eq.s32.totalorder %s21, 1
      %p161 = por %p159, %p160
      %p162 = scmp.ne.s32.totalorder %s151, %s152
      %p163 = scmp.eq.s32.totalorder %s21, 0
      %p164 = por %p162, %p163
      %p165 = scmp.ne.s32.totalorder %s151, %s152
      %p166 = scmp.eq.s32.totalorder %s22, 1
      %p167 = por %p165, %p166
      %p169 = scmp.ne.s32.totalorder %s152, %s168
      %p170 = scmp.eq.s32.totalorder %s22, 0
      %p171 = por %p169, %p170
      %p172 = scmp.le.s32.totalorder 1, %s16
      %p173 = scmp.lt.s32.totalorder %s16, 3
      %p174 = pnand %p172, %p173
      %p175 = pneg %p174
      // Predicated region
      $region9: #{tpu_custom_call.1} parent=5 // pred_check
        _
      $region10: #{tpu_custom_call.1} parent=5 // pred_check_branch
        %177 = sbr.rel (%p174) target = $region12
      $region11: #{tpu_custom_call.1} parent=5 // pred_region
        %s178 = ssub.s32 %s16, 1
      $region12: #{tpu_custom_call.1} parent=5 // pred_fallthru
        _
      %p179 = scmp.lt.s32.totalorder %s16, 2
      // Predicated region
      $region13: #{tpu_custom_call.1} parent=5 // pred_check
        %p180 = pneg %p179
      $region14: #{tpu_custom_call.1} parent=5 // pred_check_branch
        %182 = sbr.rel (%p180) target = $region16
      $region15: #{tpu_custom_call.1} parent=5 // pred_region
        // Predicated region
        $region17: #{tpu_custom_call.1} parent=15 // pred_check
          %p183 = pneg %p50
        $region18: #{tpu_custom_call.1} parent=15 // pred_check_branch
          %185 = sbr.rel (%p183) target = $region20
        $region19: #{tpu_custom_call.1} parent=15 // pred_region
          %s186 = smul.u32 2, %s24
          %p187 = scmp.lt.s32.totalorder %s23, 1
          %s188 = scalar_select %p187, %s23, 1
          %p189 = scmp.lt.s32.totalorder %s186, 1
          %s190 = scalar_select %p189, %s186, 1
          %s191 = smul.addr %s188, 2
          %s192 = sadd.s32 %s190, %s191
          %s193 = smul.addr %s192, 8
          %s194 = scalar_lea.vmem %s0, %s193
          %s195 = smul.u32 2, %s24
        $region20: #{tpu_custom_call.1} parent=15 // pred_fallthru
          _
        // Predicated region
        $region21: #{tpu_custom_call.1} parent=15 // pred_check
          %p196 = pneg %p78
        $region22: #{tpu_custom_call.1} parent=15 // pred_check_branch
          %198 = sbr.rel (%p196) target = $region24
        $region23: #{tpu_custom_call.1} parent=15 // pred_region
          %s199 = smul.u32 2, %s24
          %p200 = scmp.lt.s32.totalorder %s23, 1
          %s201 = scalar_select %p200, %s23, 1
          %p202 = scmp.lt.s32.totalorder %s199, 1
          %s203 = scalar_select %p202, %s199, 1
          %s204 = smul.addr %s201, 2
          %s205 = sadd.s32 %s203, %s204
          %s206 = smul.addr %s205, 8
          %s207 = scalar_lea.vmem %s1, %s206
          %s208 = smul.u32 2, %s24
        $region24: #{tpu_custom_call.1} parent=15 // pred_fallthru
          _
        // Predicated region
        $region25: #{tpu_custom_call.1} parent=15 // pred_check
          %p209 = pneg %p104
        $region26: #{tpu_custom_call.1} parent=15 // pred_check_branch
          %211 = sbr.rel (%p209) target = $region28
        $region27: #{tpu_custom_call.1} parent=15 // pred_region
          %s212 = sand.u32 %s94, 1
          %s213 = scalar_lea.sflag [#allocation3], %s212
          %s214 = sand.u32 %s94, 1
          %s215 = smul.addr %s214, 16
          %s216 = scalar_lea.vmem [#allocation2], %s215
          %s218 = ssub.s32 256, 256
          %219 = vsyncadd %s213, %s218
          %s220 = smul.addr %s23, 4
          %s221 = smul.addr %s220, 64
          %s222 = scalar_lea.hbm %s2, %s221
          %s223 = sshll.u32 %s216, 4
          %s224 = int_to_ptr.vmem [resolvable:$true] %s223
          %229 = dma.hbm_to_vmem [thread:$0]  %s222, 256, %s224, %s213, 64, 64, 4
        $region28: #{tpu_custom_call.1} parent=15 // pred_fallthru
          _
        // Predicated region
        $region29: #{tpu_custom_call.1} parent=15 // pred_check
          %p230 = pneg %p130
        $region30: #{tpu_custom_call.1} parent=15 // pred_check_branch
          %232 = sbr.rel (%p230) target = $region32
        $region31: #{tpu_custom_call.1} parent=15 // pred_region
          %p233 = scmp.lt.s32.totalorder %s23, 1
          %s234 = scalar_select %p233, %s23, 1
          %s235 = scalar_lea.vmem %s3, %s234
        $region32: #{tpu_custom_call.1} parent=15 // pred_fallthru
          _
      $region16: #{tpu_custom_call.1} parent=5 // pred_fallthru
        _
      %p236 = scmp.le.s32.totalorder 1, %s16
      %p237 = scmp.lt.s32.totalorder %s16, 3
      %p238 = pnand %p236, %p237
      %p239 = pneg %p238
      // Predicated region
      $region33: #{tpu_custom_call.1} parent=5 // pred_check
        _
      $region34: #{tpu_custom_call.1} parent=5 // pred_check_branch
        %241 = sbr.rel (%p238) target = $region36
      $region35: #{tpu_custom_call.1} parent=5 // pred_region
        %s242 = ssub.s32 %s16, 1
        %s243 = sand.u32 %s97, 1
        %s244 = scalar_lea.sflag [#allocation3], %s243
        %s245 = sand.u32 %s97, 1
        %s246 = smul.addr %s245, 16
        %s247 = scalar_lea.vmem [#allocation2], %s246
        // Predicated region
        $region37: #{tpu_custom_call.1} parent=35 // pred_check
          %p248 = pneg %p110
        $region38: #{tpu_custom_call.1} parent=35 // pred_check_branch
          %250 = sbr.rel (%p248) target = $region40
        $region39: #{tpu_custom_call.1} parent=35 // pred_region
          %251 = dma.done %s244, 256
        $region40: #{tpu_custom_call.1} parent=35 // pred_fallthru
          _
        %s252 = smul.u32 2, %s26
        %p253 = scmp.lt.s32.totalorder %s25, 1
        %s254 = scalar_select %p253, %s25, 1
        %p255 = scmp.lt.s32.totalorder %s252, 1
        %s256 = scalar_select %p255, %s252, 1
        %s257 = smul.addr %s254, 2
        %s258 = sadd.s32 %s256, %s257
        %s259 = smul.addr %s258, 8
        %s260 = scalar_lea.vmem %s0, %s259
        %p261 = pneg %p56
        %p262 = pneg %p53
        %s263 = smul.u32 2, %s26
        %p264 = scmp.lt.s32.totalorder %s25, 1
        %s265 = scalar_select %p264, %s25, 1
        %p266 = scmp.lt.s32.totalorder %s263, 1
        %s267 = scalar_select %p266, %s263, 1
        %s268 = smul.addr %s265, 2
        %s269 = sadd.s32 %s267, %s268
        %s270 = smul.addr %s269, 8
        %s271 = scalar_lea.vmem %s1, %s270
        %p272 = pneg %p84
        %p273 = pneg %p81
        %s274 = sand.u32 %s97, 1
        %s275 = scalar_lea.sflag [#allocation3], %s274
        %s276 = sand.u32 %s97, 1
        %s277 = smul.addr %s276, 16
        %s278 = scalar_lea.vmem [#allocation2], %s277
        %p279 = pneg %p110
        %p280 = pneg %p107
        %p281 = scmp.lt.s32.totalorder %s25, 1
        %s282 = scalar_select %p281, %s25, 1
        %s283 = scalar_lea.vmem %s3, %s282
        %p284 = pneg %p136
        %p285 = pneg %p133
        %p286 = pneg %p164
        %p287 = pneg %p161
        %s288 = sand.u32 %s151, 1
        %s289 = scalar_lea.sflag [#allocation4], %s288
        %s290 = sand.u32 %s151, 1
        %s291 = smul.addr %s290, 16
        %s292 = scalar_lea.vmem [#allocation5], %s291
        %s293 = smul.u32 2, %s26
        %p294 = scmp.lt.s32.totalorder %s25, 1
        %s295 = scalar_select %p294, %s25, 1
        %p296 = scmp.lt.s32.totalorder %s293, 1
        %s297 = scalar_select %p296, %s293, 1
        %s298 = smul.addr %s295, 2
        %s299 = sadd.s32 %s297, %s298
        %s300 = smul.addr %s299, 8
        %s301 = scalar_lea.vmem %s0, %s300
        %s302 = smul.u32 2, %s26
        %s303 = smul.u32 2, %s26
        %p304 = scmp.lt.s32.totalorder %s25, 1
        %s305 = scalar_select %p304, %s25, 1
        %p306 = scmp.lt.s32.totalorder %s303, 1
        %s307 = scalar_select %p306, %s303, 1
        %s308 = smul.addr %s305, 2
        %s309 = sadd.s32 %s307, %s308
        %s310 = smul.addr %s309, 8
        %s311 = scalar_lea.vmem %s1, %s310
        %s312 = smul.u32 2, %s26
        %p313 = scmp.lt.s32.totalorder %s25, 1
        %s314 = scalar_select %p313, %s25, 1
        %s315 = scalar_lea.vmem %s3, %s314
        %s316 = smul.u32 2, %s26
        %v318 = vld [vmem:[%s301] sm:$0xff]
        %v319 = vld [vmem:[%s301 + $0x8] sm:$0xff]
        %v320 = vlaneseq
        %v321 = vand.u32 %v320, 127
        %v322 = vld [vmem:[%s311] sm:$0xff]
        %v323 = vld [vmem:[%s311 + $0x8] sm:$0xff]
        %v324 = vadd.s32 %v322, 4
        %v325 = vadd.s32 %v323, 4
        %326 = vset.pattern.permute.xlu0 0
        %327 = vperm.xlu0 %326, %v324
        %v328 = vpop.permute.xlu0 %327
        %329 = vset.pattern.permute.xlu0 0
        %330 = vperm.xlu0 %329, %v325
        %v331 = vpop.permute.xlu0 %330
        %vm332 = vcmp.eq.s32.totalorder %v321, %v328
        %vm333 = vcmp.eq.s32.totalorder %v321, %v331
        %v334 = vsel %vm332, 1, 0
        %v335 = vsel %vm333, 1, 0
        %v336 = vcvt.s32.f32 %v334
        %v337 = vcvt.s32.f32 %v335
        %v338 = vadd.f32 %v318, %v336
        %v339 = vadd.f32 %v319, %v337
        %v340 = vadd.s32 %v322, 16
        %v341 = vadd.s32 %v323, 16
        %342 = vset.pattern.permute.xlu0 1
        %343 = vperm.xlu0 %342, %v340
        %v344 = vpop.permute.xlu0 %343
        %345 = vset.pattern.permute.xlu0 1
        %346 = vperm.xlu0 %345, %v341
        %v347 = vpop.permute.xlu0 %346
        %vm348 = vcmp.eq.s32.totalorder %v321, %v344
        %vm349 = vcmp.eq.s32.totalorder %v321, %v347
        %v350 = vsel %vm348, 1, 0
        %v351 = vsel %vm349, 1, 0
        %v352 = vcvt.s32.f32 %v350
        %v353 = vcvt.s32.f32 %v351
        %v354 = vadd.f32 %v338, %v352
        %v355 = vadd.f32 %v339, %v353
        %v356 = vadd.s32 %v322, 23
        %v357 = vadd.s32 %v323, 23
        %358 = vset.pattern.permute.xlu0 2
        %359 = vperm.xlu0 %358, %v356
        %v360 = vpop.permute.xlu0 %359
        %361 = vset.pattern.permute.xlu0 2
        %362 = vperm.xlu0 %361, %v357
        %v363 = vpop.permute.xlu0 %362
        %vm364 = vcmp.eq.s32.totalorder %v321, %v360
        %vm365 = vcmp.eq.s32.totalorder %v321, %v363
        %v366 = vsel %vm364, 1, 0
        %v367 = vsel %vm365, 1, 0
        %v368 = vcvt.s32.f32 %v366
        %v369 = vcvt.s32.f32 %v367
        %v370 = vadd.f32 %v354, %v368
        %v371 = vadd.f32 %v355, %v369
        %v372 = vpack.c.bf16 %v371, %v370
        %v373 = vld [vmem:[%s247] sm:$0xf]
        %v374 = vld [vmem:[%s247 + $0x4] sm:$0xf]
        %v375 = vld [vmem:[%s247 + $0x8] sm:$0xf]
        %v376 = vld [vmem:[%s247 + $0xc] sm:$0xf]
        %v377 = vld [vmem:[%s315] sm:$0x1]
        %v379 = vlaneseq
        %v380 = vshrl.u32 %v379, 7
        %v381 = vsub.s32 0, %v380
        %v382 = vrot.slane %v377, %v381
        %v388 = vunpack.c.l.b16 %v373
        %v389 = vunpack.c.l.b16 %v374
        %v390 = vunpack.c.l.b16 %v375
        %v391 = vunpack.c.l.b16 %v376
        %v392 = vpack.c.b16 %v389, %v388
        %v393 = vpack.c.b16 %v391, %v390
        %vm396 = vcmask 261120
        %v398 = vsel %vm396, %v372, 0
        %400 = vmatprep.subr.bf16.mxu0 0
        %401 = vmatpush1.bf16.msra.mxu0 0
        %402 = vmatprep.subr.bf16.mxu0 0
        %403 = vmatpush1.bf16.msra.mxu0 0
        %404 = vmatprep.subr.bf16.mxu0 0
        %405 = vmatpush1.bf16.msra.mxu0 0
        %406 = vmatprep.subr.bf16.mxu0 0
        %407 = vmatpush1.bf16.msra.mxu0 0
        %408 = vmatprep.subr.bf16.mxu0 0
        %409 = vmatpush1.bf16.msra.mxu0 0
        %410 = vmatprep.subr.bf16.mxu0 0
        %411 = vmatpush1.bf16.msra.mxu0 0
        %412 = vmatprep.subr.bf16.mxu0 0
        %413 = vmatpush1.bf16.msra.mxu0 %v393
        %414 = vmatprep.subr.bf16.mxu0 0
        %415 = vmatpush1.bf16.msra.mxu0 %v392
        %416 = vmatprep.subr.bf16.mxu0 0
        %417 = vmatpush2.bf16.msra.mxu0 0
        %418 = vmatprep.subr.bf16.mxu0 0
        %419 = vmatpush2.bf16.msra.mxu0 0
        %420 = vmatprep.subr.bf16.mxu0 0
        %421 = vmatpush2.bf16.msra.mxu0 0
        %422 = vmatprep.subr.bf16.mxu0 0
        %423 = vmatpush2.bf16.msra.mxu0 0
        %424 = vmatprep.subr.bf16.mxu0 0
        %425 = vmatpush2.bf16.msra.mxu0 0
        %426 = vmatprep.subr.bf16.mxu0 0
        %427 = vmatpush2.bf16.msra.mxu0 0
        %428 = vmatprep.subr.bf16.mxu0 0
        %429 = vmatpush2.bf16.msra.mxu0 0
        %430 = vmatprep.subr.bf16.mxu0 0
        %431 = vmatpush2.bf16.msra.mxu0 0
        %432 = vmatprep.mubr.bf16.mxu0 0
        %433 = vmatmul.mubr.bf16.gmra.mxu0 %v398
        %v434 = vpop.f32.mrf.mxu0
        %v435 = vadd.f32 %v382, %v434
        %v436 = vpop.f32.mrf.mxu0
        %v437 = vpop.f32.mrf.mxu0
        %v438 = vadd.f32 %v382, %v437
        %v439 = vpop.f32.mrf.mxu0
        %440 = vdwg.mxu0
        %441 = vst [vmem:[%s292] sm:$0xff] %v435
        %442 = vst [vmem:[%s292 + $0x8] sm:$0xff] %v438
        %s443 = sand.u32 %s151, 1
        %s444 = scalar_lea.sflag [#allocation4], %s443
        %s445 = sand.u32 %s151, 1
        %s446 = smul.addr %s445, 16
        %s447 = scalar_lea.vmem [#allocation5], %s446
        // Predicated region
        $region41: #{tpu_custom_call.1} parent=35 // pred_check
          %p448 = pneg %p161
        $region42: #{tpu_custom_call.1} parent=35 // pred_check_branch
          %450 = sbr.rel (%p448) target = $region44
        $region43: #{tpu_custom_call.1} parent=35 // pred_region
          %s451 = smul.u32 2, %s26
          %s453 = ssub.s32 256, 256
          %454 = vsyncadd %s444, %s453
          %s455 = smul.addr %s25, 2
          %s456 = sadd.s32 %s451, %s455
          %s457 = smul.addr %s456, 128
          %s458 = scalar_lea.hbm %s4, %s457
          %s459 = sshll.u32 %s447, 4
          %s460 = int_to_ptr.vmem [resolvable:$true] %s459
          %465 = dma.vmem_to_hbm [thread:$0]  %s460, 256, %s458, %s444, 128, 128, 8
        $region44: #{tpu_custom_call.1} parent=35 // pred_fallthru
          _
      $region36: #{tpu_custom_call.1} parent=5 // pred_fallthru
        _
      %p466 = scmp.le.s32.totalorder 2, %s16
      // Predicated region
      $region45: #{tpu_custom_call.1} parent=5 // pred_check
        %p467 = pneg %p466
      $region46: #{tpu_custom_call.1} parent=5 // pred_check_branch
        %469 = sbr.rel (%p467) target = $region48
      $region47: #{tpu_custom_call.1} parent=5 // pred_region
        %s470 = ssub.s32 %s16, 2
        // Predicated region
        $region49: #{tpu_custom_call.1} parent=47 // pred_check
          %p471 = pneg %p167
        $region50: #{tpu_custom_call.1} parent=47 // pred_check_branch
          %473 = sbr.rel (%p471) target = $region52
        $region51: #{tpu_custom_call.1} parent=47 // pred_region
          %s474 = sand.u32 %s152, 1
          %s475 = scalar_lea.sflag [#allocation4], %s474
          %s476 = sand.u32 %s152, 1
          %s477 = smul.addr %s476, 16
          %s478 = scalar_lea.vmem [#allocation5], %s477
          %479 = dma.done %s475, 256
        $region52: #{tpu_custom_call.1} parent=47 // pred_fallthru
          _
      $region48: #{tpu_custom_call.1} parent=5 // pred_fallthru
        _
    $region6: #{tpu_custom_call.1} parent=1 // loop_footer
      %s20 = sadd.s32 1, %s16
    $region7: #{tpu_custom_call.1} parent=1 // loop_footer_branch
      %15 = sbr.rel target = $region3
    $region8: #{tpu_custom_call.1} parent=1 // loop_exit
      _
    %480 = vsyncpa [#allocation3], 1
    %s481 = scalar_lea.sflag [#allocation3], 1
    %482 = vsyncpa %s481, 1
    %483 = vsyncpa [#allocation4], 1
    %s484 = scalar_lea.sflag [#allocation4], 1
    %485 = vsyncpa %s484, 1

</llo_original>
